<compile_context>
chip_gen: v7x
topology: tpu7x:2x2x1
jax: 0.10.0
libtpu: 0.0.40
codegen_flags: <defaults>
</compile_context>

<pallas_src>
import functools

import jax
import jax.numpy as jnp
from jax.experimental import pallas as pl
from jax.experimental.pallas import tpu as pltpu

EPS = 1e-8
LANES = 128


def _vmem_capacity_bytes() -> int:
    try:
        cap = getattr(pltpu.get_tpu_info(), "vmem_capacity_bytes", None)
        if cap:
            return int(cap)
    except Exception:
        pass
    return 64 << 20  # conservative fallback: v7x per-core VMEM


_VMEM_CAP = _vmem_capacity_bytes()
_BIG_VMEM = _VMEM_CAP >= (128 << 20)          # v5e / v6e (128 MiB physical)
TILE_ROWS = 8192 if _BIG_VMEM else 4096       # 4 MiB / 2 MiB f32 per input tile
TILE_ELEMS = TILE_ROWS * LANES
SUB = TILE_ROWS // 8
FAST_PATH_MAX_ELEMS = TILE_ELEMS              # <= this -> one-HBM-pass path
FAST_VMEM_LIMIT = (96 << 20) if _BIG_VMEM else (48 << 20)
TILED_VMEM_LIMIT = (96 << 20) if _BIG_VMEM else (48 << 20)


# --------------------------------------------------------------------------- #
# Small-input fast path: whole arrays resident in VMEM, one HBM pass.
# --------------------------------------------------------------------------- #
def _kl_kernel_small(p_ref, g_ref, out_ref, *, n_valid, need_mask):
    p = p_ref[...].astype(jnp.float32)
    g = g_ref[...].astype(jnp.float32)
    rows = p.shape[0]

    if need_mask:
        rid = jax.lax.broadcasted_iota(jnp.int32, (rows, LANES), 0)
        cid = jax.lax.broadcasted_iota(jnp.int32, (rows, LANES), 1)
        valid = (rid * LANES + cid) < n_valid
        min_p = jnp.min(jnp.where(valid, p, jnp.inf))
        max_p = jnp.max(jnp.where(valid, p, -jnp.inf))
        sum_p = jnp.sum(jnp.where(valid, p, 0.0))
        min_g = jnp.min(jnp.where(valid, g, jnp.inf))
        max_g = jnp.max(jnp.where(valid, g, -jnp.inf))
        sum_g = jnp.sum(jnp.where(valid, g, 0.0))
    else:
        min_p = jnp.min(p); max_p = jnp.max(p); sum_p = jnp.sum(p)
        min_g = jnp.min(g); max_g = jnp.max(g); sum_g = jnp.sum(g)

    n_f = jnp.float32(n_valid)                 # exact for n < 2^24
    d_p = max_p - min_p + EPS                  # max1 - min1 + eps
    d_g = max_g - min_g + EPS
    sn_p = (sum_p - n_f * min_p) / d_p         # sum of the min-max-normalized map
    sn_g = (sum_g - n_f * min_g) / d_g
    scale_p = 1.0 / (d_p * (sn_p + EPS))
    scale_g = 1.0 / (d_g * (sn_g + EPS))

    p_final = (p - min_p) * scale_p
    g_final = (g - min_g) * scale_g
    term = g_final * jnp.log(g_final / (p_final + EPS) + EPS)
    if need_mask:
        term = jnp.where(valid, term, 0.0)
    out_ref[0, 0] = jnp.sum(term)


# --------------------------------------------------------------------------- #
# Large-input tiled path: two streaming passes (stats, then KL).
# --------------------------------------------------------------------------- #
def _kl_kernel_tiled(p_ref, g_ref, out_ref,
                     s_minp, s_maxp, s_sump, s_ming, s_maxg, s_sumg, s_kl,
                     *, n_valid, rem):
    phase = pl.program_id(0)
    t = pl.program_id(1)
    nt = pl.num_programs(1)
    is_last = t == nt - 1
    last_partial = rem < TILE_ELEMS            # static python bool

    p3 = p_ref[...].astype(jnp.float32).reshape(SUB, 8, LANES)
    g3 = g_ref[...].astype(jnp.float32).reshape(SUB, 8, LANES)

    def last_tile_mask():
        rid = jax.lax.broadcasted_iota(jnp.int32, (TILE_ROWS, LANES), 0)
        cid = jax.lax.broadcasted_iota(jnp.int32, (TILE_ROWS, LANES), 1)
        return ((rid * LANES + cid) < rem).reshape(SUB, 8, LANES)

    def fold(pmin3, pmax3, psum3, gmin3, gmax3, gsum3):
        s_minp[...] = jnp.minimum(s_minp[...], jnp.min(pmin3, axis=0))
        s_maxp[...] = jnp.maximum(s_maxp[...], jnp.max(pmax3, axis=0))
        s_sump[...] = s_sump[...] + jnp.sum(psum3, axis=0)
        s_ming[...] = jnp.minimum(s_ming[...], jnp.min(gmin3, axis=0))
        s_maxg[...] = jnp.maximum(s_maxg[...], jnp.max(gmax3, axis=0))
        s_sumg[...] = s_sumg[...] + jnp.sum(gsum3, axis=0)

    def kl_term():
        # After phase 0: s_minp/s_ming hold broadcast mins, s_maxp/s_maxg hold
        # broadcast 1/(d*(s+eps)) scales.  Pure VPU work + one EUP rcp + log.
        p_final = (p3 - s_minp[...]) * s_maxp[...]
        g_final = (g3 - s_ming[...]) * s_maxg[...]
        ratio = g_final * pl.reciprocal(p_final + EPS, approx=True)
        return g_final * jnp.log(ratio + EPS)

    # ---- init accumulators -------------------------------------------------
    @pl.when(jnp.logical_and(phase == 0, t == 0))
    def _init_stats():
        s_minp[...] = jnp.full_like(s_minp, jnp.inf)
        s_maxp[...] = jnp.full_like(s_maxp, -jnp.inf)
        s_sump[...] = jnp.zeros_like(s_sump)
        s_ming[...] = jnp.full_like(s_ming, jnp.inf)
        s_maxg[...] = jnp.full_like(s_maxg, -jnp.inf)
        s_sumg[...] = jnp.zeros_like(s_sumg)

    @pl.when(jnp.logical_and(phase == 1, t == 0))
    def _init_kl():
        s_kl[...] = jnp.zeros_like(s_kl)

    # ---- phase 0: per-map min / max / sum -----------------------------------
    @pl.when(jnp.logical_and(phase == 0, jnp.logical_not(is_last)))
    def _stats_interior():
        fold(p3, p3, p3, g3, g3, g3)

    @pl.when(jnp.logical_and(phase == 0, is_last))
    def _stats_last():
        if last_partial:
            v = last_tile_mask()
            fold(jnp.where(v, p3, jnp.inf), jnp.where(v, p3, -jnp.inf),
                 jnp.where(v, p3, 0.0),
                 jnp.where(v, g3, jnp.inf), jnp.where(v, g3, -jnp.inf),
                 jnp.where(v, g3, 0.0))
        else:
            fold(p3, p3, p3, g3, g3, g3)

        # Single cross-lane reduce + scalar prep, once per kernel invocation.
        min_p = jnp.min(s_minp[...]); max_p = jnp.max(s_maxp[...])
        sum_p = jnp.sum(s_sump[...])
        min_g = jnp.min(s_ming[...]); max_g = jnp.max(s_maxg[...])
        sum_g = jnp.sum(s_sumg[...])

        n_f = jnp.float32(n_valid)             # exact for n < 2^24
        d_p = max_p - min_p + EPS
        d_g = max_g - min_g + EPS
        sn_p = (sum_p - n_f * min_p) / d_p
        sn_g = (sum_g - n_f * min_g) / d_g
        # Reuse the (now dead) phase-0 accumulators as broadcast stat vectors so
        # phase 1 reads (8,128) VMEM vectors instead of re-broadcasting scalars.
        s_minp[...] = jnp.broadcast_to(min_p, (8, LANES))
        s_maxp[...] = jnp.broadcast_to(1.0 / (d_p * (sn_p + EPS)), (8, LANES))
        s_ming[...] = jnp.broadcast_to(min_g, (8, LANES))
        s_maxg[...] = jnp.broadcast_to(1.0 / (d_g * (sn_g + EPS)), (8, LANES))

    # ---- phase 1: KL accumulation -------------------------------------------
    @pl.when(jnp.logical_and(phase == 1, jnp.logical_not(is_last)))
    def _kl_interior():
        s_kl[...] = s_kl[...] + jnp.sum(kl_term(), axis=0)

    @pl.when(jnp.logical_and(phase == 1, is_last))
    def _kl_last():
        term = kl_term()
        if last_partial:
            term = jnp.where(last_tile_mask(), term, 0.0)
        s_kl[...] = s_kl[...] + jnp.sum(term, axis=0)
        out_ref[0, 0] = jnp.sum(s_kl[...])


# --------------------------------------------------------------------------- #
# Wrapper
# --------------------------------------------------------------------------- #
def kl_loss_pallas(map_pred, map_gtd):
    p = map_pred.reshape(-1)
    g = map_gtd.reshape(-1)
    n = p.shape[0]
    assert g.shape[0] == n, "pred and gtd must have the same number of elements"
    assert n >= 1

    if n <= FAST_PATH_MAX_ELEMS:
        # Single-shot path: whole arrays in VMEM (pad only to an (8,128) grain;
        # cheap at these sizes), one HBM pass, one grid step.
        rows = ((-(-n // LANES) + 7) // 8) * 8
        pad = rows * LANES - n
        if pad:
            p = jnp.pad(p, (0, pad))
            g = jnp.pad(g, (0, pad))
        p2 = p.reshape(rows, LANES)
        g2 = g.reshape(rows, LANES)
        kernel = functools.partial(_kl_kernel_small, n_valid=n, need_mask=pad > 0)
        out = pl.pallas_call(
            kernel,
            out_shape=jax.ShapeDtypeStruct((1, 1), jnp.float32),
            grid_spec=pltpu.PrefetchScalarGridSpec(
                num_scalar_prefetch=0,
                grid=(1,),
                in_specs=[
                    pl.BlockSpec((rows, LANES), lambda i: (0, 0)),
                    pl.BlockSpec((rows, LANES), lambda i: (0, 0)),
                ],
                out_specs=pl.BlockSpec(memory_space=pltpu.SMEM),
            ),
            compiler_params=pltpu.CompilerParams(
                dimension_semantics=("arbitrary",),
                vmem_limit_bytes=FAST_VMEM_LIMIT),
        )(p2, g2)
        return out[0, 0]

    # Tiled two-pass streaming path.  Only pad when n is not lane-aligned; the
    # last tile may extend past the array (undefined contents) and is masked
    # in-kernel, so no full-array pad copy is needed in the common case.
    rows = -(-n // LANES)
    pad = rows * LANES - n
    if pad:  # rare: only when n % 128 != 0
        p = jnp.pad(p, (0, pad))
        g = jnp.pad(g, (0, pad))
    p2 = p.reshape(rows, LANES)
    g2 = g.reshape(rows, LANES)
    num_tiles = -(-rows // TILE_ROWS)          # == cdiv(n, TILE_ELEMS)
    rem = n - (num_tiles - 1) * TILE_ELEMS     # valid elements in the last tile

    kernel = functools.partial(_kl_kernel_tiled, n_valid=n, rem=rem)
    out = pl.pallas_call(
        kernel,
        out_shape=jax.ShapeDtypeStruct((1, 1), jnp.float32),
        grid_spec=pltpu.PrefetchScalarGridSpec(
            num_scalar_prefetch=0,
            grid=(2, num_tiles),
            in_specs=[
                pl.BlockSpec((TILE_ROWS, LANES), lambda ph, t: (t, 0)),
                pl.BlockSpec((TILE_ROWS, LANES), lambda ph, t: (t, 0)),
            ],
            out_specs=pl.BlockSpec(memory_space=pltpu.SMEM),
            scratch_shapes=[pltpu.VMEM((8, LANES), jnp.float32)] * 7,
        ),
        compiler_params=pltpu.CompilerParams(
            dimension_semantics=("arbitrary", "arbitrary"),
            vmem_limit_bytes=TILED_VMEM_LIMIT),
    )(p2, g2)
    return out[0, 0]


# --------------------------------------------------------------------------- #
# Pure-JAX reference (mirrors the torch module)
# --------------------------------------------------------------------------- #
def kl_loss_ref(map_pred, map_gtd):
    eps = 1e-8
    p = map_pred.astype(jnp.float32).reshape(-1)
    g = map_gtd.astype(jnp.float32).reshape(-1)
    p = (p - p.min()) / (p.max() - p.min() + eps)
    g = (g - g.min()) / (g.max() - g.min() + eps)
    p = p / (p.sum() + eps)
    g = g / (g.sum() + eps)
    return jnp.sum(g * jnp.log(g / (p + eps) + eps))


if __name__ == "__main__":
    key = jax.random.PRNGKey(0)
    keys = jax.random.split(key, 8)

    def check(name, shape, kp, kg, rtol, atol):
        pred = jax.random.uniform(kp, shape, dtype=jnp.float32)
        gtd = jax.random.uniform(kg, shape, dtype=jnp.float32)
        out = jax.block_until_ready(kl_loss_pallas(pred, gtd))
        ref = jax.block_until_ready(kl_loss_ref(pred, gtd))
        if not jnp.allclose(out, ref, rtol=rtol, atol=atol):
            raise AssertionError(f"{name} mismatch: pallas={out} ref={ref}")

    # Canonical small saliency-map-like NCHW input -> fast path, no masking.
    check("small", (2, 4, 16, 16), keys[0], keys[1], 1e-3, 1e-5)
    # Non-lane-aligned element count -> fast path with in-kernel tail mask.
    check("odd", (1, 1, 17, 23), keys[2], keys[3], 1e-3, 1e-5)
    # Mid-size map -> now the single-shot (one HBM pass) path.
    check("mid", (1, 3, 256, 256), keys[4], keys[5], 2e-3, 1e-4)
    # Large map -> tiled two-pass streaming path with a partial (masked) last
    # tile and no host-side pad; looser tolerance covers approx reciprocal.
    check("large", (1, 3, 640, 720), keys[6], keys[7], 1e-2, 1e-3)

    print("KERNEL_OK")
</pallas_src>

<mosaic_0001>
module attributes {stable_mosaic.version = 11 : i64} {
  func.func @_kl_kernel_small(%arg0: i32, %arg1: memref<16x128xf32, #tpu.memory_space<vmem>>, %arg2: memref<16x128xf32, #tpu.memory_space<vmem>>, %arg3: memref<1x1xf32, #tpu.memory_space<smem>>) attributes {dimension_semantics = [#tpu.dimension_semantics<arbitrary>], iteration_bounds = array<i64: 1>, scalar_prefetch = 0 : i64, scratch_operands = 0 : i64, tpu.core_type = #tpu.core_type<tc>, window_params = [{pipeline_mode = #tpu.pipeline_mode<synchronous>, transform_indices = @transform_0, window_bounds = array<i64: 16, 128>}, {pipeline_mode = #tpu.pipeline_mode<synchronous>, transform_indices = @transform_1, window_bounds = array<i64: 16, 128>}, {transform_indices = @transform_2, window_bounds = array<i64: 1, 1>}]} {
    %c0 = arith.constant 0 : index
    %c0_0 = arith.constant 0 : index
    %0 = vector.load %arg1[%c0, %c0_0] : memref<16x128xf32, #tpu.memory_space<vmem>>, vector<16x128xf32>
    %c0_1 = arith.constant 0 : index
    %c0_2 = arith.constant 0 : index
    %1 = vector.load %arg2[%c0_1, %c0_2] : memref<16x128xf32, #tpu.memory_space<vmem>>, vector<16x128xf32>
    %2 = vector.shape_cast %0 : vector<16x128xf32> to vector<1x16x128xf32>
    %cst = arith.constant dense<0x7F800000> : vector<1xf32>
    %3 = vector.multi_reduction <minimumf>, %2, %cst [1, 2] : vector<1x16x128xf32> to vector<1xf32>
    %4 = vector.shape_cast %3 : vector<1xf32> to vector<1x1x1xf32>
    %5 = vector.extract %4[0, 0, 0] : f32 from vector<1x1x1xf32>
    %6 = vector.shape_cast %0 : vector<16x128xf32> to vector<1x16x128xf32>
    %cst_3 = arith.constant dense<0xFF800000> : vector<1xf32>
    %7 = vector.multi_reduction <maximumf>, %6, %cst_3 [1, 2] : vector<1x16x128xf32> to vector<1xf32>
    %8 = vector.shape_cast %7 : vector<1xf32> to vector<1x1x1xf32>
    %9 = vector.extract %8[0, 0, 0] : f32 from vector<1x1x1xf32>
    %10 = vector.shape_cast %0 : vector<16x128xf32> to vector<1x16x128xf32>
    %cst_4 = arith.constant dense<0.000000e+00> : vector<1xf32>
    %11 = vector.multi_reduction <add>, %10, %cst_4 [1, 2] : vector<1x16x128xf32> to vector<1xf32>
    %12 = vector.shape_cast %11 : vector<1xf32> to vector<1x1x1xf32>
    %13 = vector.extract %12[0, 0, 0] : f32 from vector<1x1x1xf32>
    %14 = vector.shape_cast %1 : vector<16x128xf32> to vector<1x16x128xf32>
    %cst_5 = arith.constant dense<0x7F800000> : vector<1xf32>
    %15 = vector.multi_reduction <minimumf>, %14, %cst_5 [1, 2] : vector<1x16x128xf32> to vector<1xf32>
    %16 = vector.shape_cast %15 : vector<1xf32> to vector<1x1x1xf32>
    %17 = vector.extract %16[0, 0, 0] : f32 from vector<1x1x1xf32>
    %18 = vector.shape_cast %1 : vector<16x128xf32> to vector<1x16x128xf32>
    %cst_6 = arith.constant dense<0xFF800000> : vector<1xf32>
    %19 = vector.multi_reduction <maximumf>, %18, %cst_6 [1, 2] : vector<1x16x128xf32> to vector<1xf32>
    %20 = vector.shape_cast %19 : vector<1xf32> to vector<1x1x1xf32>
    %21 = vector.extract %20[0, 0, 0] : f32 from vector<1x1x1xf32>
    %22 = vector.shape_cast %1 : vector<16x128xf32> to vector<1x16x128xf32>
    %cst_7 = arith.constant dense<0.000000e+00> : vector<1xf32>
    %23 = vector.multi_reduction <add>, %22, %cst_7 [1, 2] : vector<1x16x128xf32> to vector<1xf32>
    %24 = vector.shape_cast %23 : vector<1xf32> to vector<1x1x1xf32>
    %25 = vector.extract %24[0, 0, 0] : f32 from vector<1x1x1xf32>
    %26 = arith.subf %9, %5 : f32
    %cst_8 = arith.constant 9.99999993E-9 : f32
    %27 = arith.addf %26, %cst_8 : f32
    %28 = arith.subf %21, %17 : f32
    %cst_9 = arith.constant 9.99999993E-9 : f32
    %29 = arith.addf %28, %cst_9 : f32
    %cst_10 = arith.constant 2.048000e+03 : f32
    %30 = arith.mulf %cst_10, %5 : f32
    %31 = arith.subf %13, %30 : f32
    %32 = arith.divf %31, %27 : f32
    %cst_11 = arith.constant 2.048000e+03 : f32
    %33 = arith.mulf %cst_11, %17 : f32
    %34 = arith.subf %25, %33 : f32
    %35 = arith.divf %34, %29 : f32
    %cst_12 = arith.constant 9.99999993E-9 : f32
    %36 = arith.addf %32, %cst_12 : f32
    %37 = arith.mulf %27, %36 : f32
    %cst_13 = arith.constant 1.000000e+00 : f32
    %38 = arith.divf %cst_13, %37 : f32
    %cst_14 = arith.constant 9.99999993E-9 : f32
    %39 = arith.addf %35, %cst_14 : f32
    %40 = arith.mulf %29, %39 : f32
    %cst_15 = arith.constant 1.000000e+00 : f32
    %41 = arith.divf %cst_15, %40 : f32
    %42 = vector.broadcast %5 : f32 to vector<16x128xf32>
    %43 = arith.subf %0, %42 : vector<16x128xf32>
    %44 = vector.broadcast %38 : f32 to vector<16x128xf32>
    %45 = arith.mulf %43, %44 : vector<16x128xf32>
    %46 = vector.broadcast %17 : f32 to vector<16x128xf32>
    %47 = arith.subf %1, %46 : vector<16x128xf32>
    %48 = vector.broadcast %41 : f32 to vector<16x128xf32>
    %49 = arith.mulf %47, %48 : vector<16x128xf32>
    %cst_16 = arith.constant 9.99999993E-9 : f32
    %50 = vector.broadcast %cst_16 : f32 to vector<16x128xf32>
    %51 = arith.addf %45, %50 : vector<16x128xf32>
    %52 = arith.divf %49, %51 : vector<16x128xf32>
    %cst_17 = arith.constant 9.99999993E-9 : f32
    %53 = vector.broadcast %cst_17 : f32 to vector<16x128xf32>
    %54 = arith.addf %52, %53 : vector<16x128xf32>
    %55 = math.log %54 : vector<16x128xf32>
    %56 = arith.mulf %49, %55 : vector<16x128xf32>
    %57 = vector.shape_cast %56 : vector<16x128xf32> to vector<1x16x128xf32>
    %cst_18 = arith.constant dense<0.000000e+00> : vector<1xf32>
    %58 = vector.multi_reduction <add>, %57, %cst_18 [1, 2] : vector<1x16x128xf32> to vector<1xf32>
    %59 = vector.shape_cast %58 : vector<1xf32> to vector<1x1x1xf32>
    %60 = vector.extract %59[0, 0, 0] : f32 from vector<1x1x1xf32>
    %c0_19 = arith.constant 0 : index
    %c0_20 = arith.constant 0 : index
    %61 = memref.load %arg3[%c0_19, %c0_20] : memref<1x1xf32, #tpu.memory_space<smem>>
    memref.store %60, %arg3[%c0_19, %c0_20] : memref<1x1xf32, #tpu.memory_space<smem>>
    return
  }
  func.func @transform_0(%arg0: i32) -> (i32, i32) {
    %c0_i32 = arith.constant 0 : i32
    %c0_i32_0 = arith.constant 0 : i32
    %c0_i32_1 = arith.constant 0 : i32
    return %c0_i32, %c0_i32_0 : i32, i32
  }
  func.func @transform_1(%arg0: i32) -> (i32, i32) {
    %c0_i32 = arith.constant 0 : i32
    %c0_i32_0 = arith.constant 0 : i32
    %c0_i32_1 = arith.constant 0 : i32
    return %c0_i32, %c0_i32_0 : i32, i32
  }
  func.func @transform_2(%arg0: i32) -> (i32, i32) {
    %c0_i32 = arith.constant 0 : i32
    %c0_i32_0 = arith.constant 0 : i32
    %c0_i32_1 = arith.constant 0 : i32
    return %c0_i32, %c0_i32_0 : i32, i32
  }
}

</mosaic_0001>

<llo_original>
// kernel: tpu_custom_call.1
$region0: #{tpu_custom_call.1}
  #allocation0 [shape = 'u32[]', space=smem, size = 0x4, offset = 0x4, fixed_abs, tag = 'smem constant byte address 0x4 - core index']
  #allocation1 [shape = 'u32[144,128]{1,0:T(1,128)}', space=vmem, size = 0x12000, scoped, tag = 'internal scratch']
  %s0 = inlined_call_operand.hbm [shape: f32[16,128], index: 0, kind: input, shape index: {}]
  %s1 = inlined_call_operand.hbm [shape: f32[16,128], index: 1, kind: input, shape index: {}]
  %s2 = inlined_call_operand.hbm [shape: f32[1,1], index: 2, kind: output, shape index: {}]
  %s3 = sld [smem:[#allocation0]]
  $region26: #{tpu_custom_call.1} parent=0
    _
  %s5 = ssub.s32 1, %s3
  %s6 = scalar_select 0, %s5, %s3
  $region1: #{tpu_custom_call.1} parent=0
    #allocation2 [shape = 'u8[8192]{0}', space=vmem, size = 0x2000, scoped, tag = 'input window, operand 0, single buffered']
    #allocation3 [shape = 's32[1]{0}', space=sflag, size = 0x4, scoped, tag = 'scoped memory for tpu_custom_call.1']
    #allocation4 [shape = 's32[1]{0}', space=sflag, size = 0x4, scoped, tag = 'scoped memory for tpu_custom_call.1']
    #allocation5 [shape = 'u8[8192]{0}', space=vmem, size = 0x2000, scoped, tag = 'input window, operand 1, single buffered']
    #allocation6 [shape = 's32[1]{0}', space=sflag, size = 0x4, scoped, tag = 'scoped memory for tpu_custom_call.1']
    #allocation7 [shape = 'u8[512]{0}', space=smem, size = 0x200, scoped, tag = 'output window, operand 0, single buffered']
    %7 = vsyncpa [#allocation3], 0
    %8 = vsyncpa [#allocation6], 0
    %9 = vsyncpa [#allocation4], 0
    // Predicated region
    $region2: #{tpu_custom_call.1} parent=1 // pred_check
      _
    $region3: #{tpu_custom_call.1} parent=1 // pred_check_branch
      %11 = sbr.rel (0) target = $region5
    $region4: #{tpu_custom_call.1} parent=1 // pred_region
      %s13 = ssub.s32 256, 256
      %14 = vsyncadd [#allocation3], %s13
      %s15 = sshll.u32 [#allocation2], 4
      %s16 = int_to_ptr.vmem [resolvable:$true] %s15
      %21 = dma.hbm_to_vmem [thread:$0]  %s0, 256, %s16, [#allocation3], 128, 128, 8
    $region5: #{tpu_custom_call.1} parent=1 // pred_fallthru
      _
    // Predicated region
    $region6: #{tpu_custom_call.1} parent=1 // pred_check
      _
    $region7: #{tpu_custom_call.1} parent=1 // pred_check_branch
      %23 = sbr.rel (0) target = $region9
    $region8: #{tpu_custom_call.1} parent=1 // pred_region
      %s25 = ssub.s32 256, 256
      %26 = vsyncadd [#allocation6], %s25
      %s27 = sshll.u32 [#allocation5], 4
      %s28 = int_to_ptr.vmem [resolvable:$true] %s27
      %33 = dma.hbm_to_vmem [thread:$0]  %s1, 256, %s28, [#allocation6], 128, 128, 8
    $region9: #{tpu_custom_call.1} parent=1 // pred_fallthru
      _
    // Predicated region
    $region10: #{tpu_custom_call.1} parent=1 // pred_check
      _
    $region11: #{tpu_custom_call.1} parent=1 // pred_check_branch
      %35 = sbr.rel (0) target = $region13
    $region12: #{tpu_custom_call.1} parent=1 // pred_region
      %36 = dma.done [#allocation3], 256
    $region13: #{tpu_custom_call.1} parent=1 // pred_fallthru
      _
    // Predicated region
    $region14: #{tpu_custom_call.1} parent=1 // pred_check
      _
    $region15: #{tpu_custom_call.1} parent=1 // pred_check_branch
      %38 = sbr.rel (0) target = $region17
    $region16: #{tpu_custom_call.1} parent=1 // pred_region
      %39 = dma.done [#allocation6], 256
    $region17: #{tpu_custom_call.1} parent=1 // pred_fallthru
      _
    %v40 = vld [vmem:[#allocation2] sm:$0xff]
    %v41 = vld [vmem:[#allocation2 + $0x8] sm:$0xff]
    %v42 = vld [vmem:[#allocation5] sm:$0xff]
    %v43 = vld [vmem:[#allocation5 + $0x8] sm:$0xff]
    %v44 = vmin.f32 %v40, %v41
    %45 = vmin.xlane.f32.xlu0 %v44
    %v46 = vpop.xlane.xlu0 %45
    %v47 = vrot.slane %v46, 4
    %v48 = vmin.f32 %v46, %v47
    %v49 = vrot.slane %v48, 2
    %v50 = vmin.f32 %v48, %v49
    %v51 = vrot.slane %v50, 1
    %v52 = vmin.f32 %v50, %v51
    %s53 = vtos %v52
    %v54 = vmax.f32 %v40, %v41
    %55 = vmax.xlane.f32.xlu0 %v54
    %v56 = vpop.xlane.xlu0 %55
    %v57 = vrot.slane %v56, 4
    %v58 = vmax.f32 %v56, %v57
    %v59 = vrot.slane %v58, 2
    %v60 = vmax.f32 %v58, %v59
    %v61 = vrot.slane %v60, 1
    %v62 = vmax.f32 %v60, %v61
    %s63 = vtos %v62
    %v64 = vadd.f32 %v40, %v41
    %65 = vadd.xlane.f32.xlu0 %v64
    %v66 = vpop.xlane.xlu0 %65
    %v67 = vrot.slane %v66, 4
    %v68 = vadd.f32 %v66, %v67
    %v69 = vrot.slane %v68, 2
    %v70 = vadd.f32 %v68, %v69
    %v71 = vrot.slane %v70, 1
    %v72 = vadd.f32 %v70, %v71
    %s73 = vtos %v72
    %v74 = vmin.f32 %v42, %v43
    %75 = vmin.xlane.f32.xlu0 %v74
    %v76 = vpop.xlane.xlu0 %75
    %v77 = vrot.slane %v76, 4
    %v78 = vmin.f32 %v76, %v77
    %v79 = vrot.slane %v78, 2
    %v80 = vmin.f32 %v78, %v79
    %v81 = vrot.slane %v80, 1
    %v82 = vmin.f32 %v80, %v81
    %s83 = vtos %v82
    %v84 = vmax.f32 %v42, %v43
    %85 = vmax.xlane.f32.xlu0 %v84
    %v86 = vpop.xlane.xlu0 %85
    %v87 = vrot.slane %v86, 4
    %v88 = vmax.f32 %v86, %v87
    %v89 = vrot.slane %v88, 2
    %v90 = vmax.f32 %v88, %v89
    %v91 = vrot.slane %v90, 1
    %v92 = vmax.f32 %v90, %v91
    %s93 = vtos %v92
    %v94 = vadd.f32 %v42, %v43
    %95 = vadd.xlane.f32.xlu0 %v94
    %v96 = vpop.xlane.xlu0 %95
    %v97 = vrot.slane %v96, 4
    %v98 = vadd.f32 %v96, %v97
    %v99 = vrot.slane %v98, 2
    %v100 = vadd.f32 %v98, %v99
    %v101 = vrot.slane %v100, 1
    %v102 = vadd.f32 %v100, %v101
    %s103 = vtos %v102
    %s104 = ssub.f32 %s63, %s53
    %s105 = sadd.f32 %s104, 1e-08
    %s106 = ssub.f32 %s93, %s83
    %s107 = sadd.f32 %s106, 1e-08
    %s108 = smul.f32 %s53, 2048.0
    %s109 = ssub.f32 %s73, %s108
    %v110 = vstv %s105
    %v111 = vrcp.pop %v110
    %s112 = vtos %v111
    %s113 = smul.f32 %s109, %s112
    %s114 = smul.f32 %s83, 2048.0
    %s115 = ssub.f32 %s103, %s114
    %v116 = vstv %s107
    %v117 = vrcp.pop %v116
    %s118 = vtos %v117
    %s119 = smul.f32 %s115, %s118
    %s120 = sadd.f32 %s113, 1e-08
    %s121 = smul.f32 %s105, %s120
    %v122 = vstv %s121
    %v123 = vrcp.pop %v122
    %s124 = vtos %v123
    %s125 = sadd.f32 %s119, 1e-08
    %s126 = smul.f32 %s107, %s125
    %v127 = vstv %s126
    %v128 = vrcp.pop %v127
    %s129 = vtos %v128
    %v130 = vstv %s53
    %v131 = vsub.f32 %v40, %v130
    %v132 = vsub.f32 %v41, %v130
    %v133 = vstv %s124
    %v134 = vmul.f32 %v131, %v133
    %v135 = vmul.f32 %v132, %v133
    %v136 = vstv %s83
    %v137 = vsub.f32 %v42, %v136
    %v138 = vsub.f32 %v43, %v136
    %v139 = vstv %s129
    %v140 = vmul.f32 %v137, %v139
    %v141 = vmul.f32 %v138, %v139
    %v142 = vadd.f32 %v134, 1e-08
    %v143 = vadd.f32 %v135, 1e-08
    %v144 = vrcp.pop %v142
    %v145 = vmul.f32 %v140, %v144
    %v146 = vrcp.pop %v143
    %v147 = vmul.f32 %v141, %v146
    %v148 = vadd.f32 %v145, 1e-08
    %v149 = vadd.f32 %v147, 1e-08
    %v150 = vlog2.pop %v148
    %v151 = vmul.f32 %v150, 0.6931472
    %v152 = vlog2.pop %v149
    %v153 = vmul.f32 %v152, 0.6931472
    %v154 = vmul.f32 %v140, %v151
    %v155 = vmul.f32 %v141, %v153
    %v156 = vadd.f32 %v154, %v155
    %157 = vadd.xlane.f32.xlu0 %v156
    %v158 = vpop.xlane.xlu0 %157
    %v159 = vrot.slane %v158, 4
    %v160 = vadd.f32 %v158, %v159
    %v161 = vrot.slane %v160, 2
    %v162 = vadd.f32 %v160, %v161
    %v163 = vrot.slane %v162, 1
    %v164 = vadd.f32 %v162, %v163
    %s165 = vtos %v164
    %s166 = scalar_lea.smem [#allocation7], 0
    %167 = sst [smem:[%s166]] %s165
    // Predicated region
    $region18: #{tpu_custom_call.1} parent=1 // pred_check
      _
    $region19: #{tpu_custom_call.1} parent=1 // pred_check_branch
      %169 = sbr.rel (0) target = $region21
    $region20: #{tpu_custom_call.1} parent=1 // pred_region
      %s171 = ssub.s32 16, 16
      %172 = vsyncadd [#allocation4], %s171
      %175 = dma.smem_to_hbm [#allocation7], 16, %s2, [#allocation4]
    $region21: #{tpu_custom_call.1} parent=1 // pred_fallthru
      _
    // Predicated region
    $region22: #{tpu_custom_call.1} parent=1 // pred_check
      _
    $region23: #{tpu_custom_call.1} parent=1 // pred_check_branch
      %177 = sbr.rel (0) target = $region25
    $region24: #{tpu_custom_call.1} parent=1 // pred_region
      %178 = dma.done [#allocation4], 16
    $region25: #{tpu_custom_call.1} parent=1 // pred_fallthru
      _
    %179 = sfence
    %180 = vsyncpa [#allocation3], 1
    %181 = vsyncpa [#allocation6], 1
    %182 = vsyncpa [#allocation4], 1

</llo_original>
